<compile_context>
chip_gen: v5e
topology: v5e:2x2
jax: 0.10.0
libtpu: 0.0.40
codegen_flags: <defaults>
</compile_context>

<pallas_src>
import numpy as np

import jax
import jax.numpy as jnp
from jax.experimental import pallas as pl
from jax.experimental.pallas import tpu as pltpu


def _cdiv(a, b):
    return -(-a // b)


def _round_up(x, m):
    return _cdiv(x, m) * m


def _make_gated_fusion_kernel(channel_list):
    """Builds the kernel for a fixed per-sensor channel split.

    Kernel ref layout (n = number of sensors, F = n groups):
      refs[0:n]      x_i  : (1, c_i, tp)   sensor i, pixels on the lane axis
      refs[n:2n]     w_i  : (F,  c_i)      gate-weight columns for sensor i
      refs[2n]       b    : (F,  1)        gate bias
      refs[2n+1]     o    : (1, Ctot, tp)  fused output (channel-concatenated)
    """
    n = len(channel_list)

    def kernel(*refs):
        x_refs = refs[:n]
        w_refs = refs[n:2 * n]
        b_ref = refs[2 * n]
        o_ref = refs[2 * n + 1]

        xs = [x_refs[i][0].astype(jnp.float32) for i in range(n)]          # (c_i, tp)

        # Per-group logits: sum over sensors of W[:, off_i:off_i+c_i] @ x_i  (MXU)
        logits = jnp.dot(w_refs[0][...], xs[0],
                         preferred_element_type=jnp.float32)               # (F, tp)
        for i in range(1, n):
            logits = logits + jnp.dot(w_refs[i][...], xs[i],
                                      preferred_element_type=jnp.float32)
        logits = logits + b_ref[...]                                        # (F, tp)

        # Softmax over the F sensor groups (columns are independent pixels).
        m = jnp.max(logits, axis=0, keepdims=True)                          # (1, tp)
        e = jnp.exp(logits - m)                                             # (F, tp)
        denom = jnp.sum(e, axis=0, keepdims=True)                           # (1, tp)
        z = e * pl.reciprocal(denom, approx=False)                          # (F, tp)

        # Gate each sensor by its group weight and write into its channel slice.
        off = 0
        for i, c in enumerate(channel_list):
            o_ref[0, off:off + c, :] = (xs[i] * z[i:i + 1, :]).astype(o_ref.dtype)
            off += c

    return kernel


class GatedFusionModuleJAX:
    """JAX/Pallas port of GatedFusionModule. Sensors are NCHW like the PyTorch code."""

    def __init__(self, enc_channel_list, key, tile_pixels=32768):
        self.enc_channel_list = [int(c) for c in enc_channel_list]
        self.num_features = len(self.enc_channel_list)
        self.ctot = int(np.sum(self.enc_channel_list))
        self.tile_pixels = int(tile_pixels)

        k_w, k_b = jax.random.split(key)
        bound = 1.0 / np.sqrt(self.ctot)
        # nn.Linear-shaped parameters: weight (F, Ctot), bias (F,)
        self.weight = jax.random.uniform(k_w, (self.num_features, self.ctot),
                                         jnp.float32, -bound, bound)
        self.bias = jax.random.uniform(k_b, (self.num_features,),
                                       jnp.float32, -bound, bound)

        # Per-sensor column slices of the gate weight (avoids any concat).
        offs = np.cumsum([0] + self.enc_channel_list)
        self.w_slices = [self.weight[:, offs[i]:offs[i + 1]]
                         for i in range(self.num_features)]                 # (F, c_i)
        self.b_col = self.bias.reshape(self.num_features, 1)                # (F, 1)

        self._kernel = _make_gated_fusion_kernel(self.enc_channel_list)

    def _choose_tile(self, B, P):
        """Pick a lane-aligned pixel-tile size and the pixel-grid extent."""
        n_tiles = _cdiv(P, self.tile_pixels)
        if B == 1 and n_tiles < 2 and P >= 256:
            n_tiles = 2          # keep both v7x TensorCores busy for small batches
        tp = _round_up(_cdiv(P, n_tiles), 128)
        if tp >= P:
            # Single block spanning the whole pixel axis (block dim == full array
            # dim is always legal, even when P is not a multiple of 128).
            return P, 1
        # 128-aligned tiles; Pallas masks the ragged final tile's writes.
        return tp, _cdiv(P, tp)

    def __call__(self, sensor_list):
        B, _, H, W = sensor_list[0].shape
        P = H * W
        out_dtype = sensor_list[0].dtype

        # NCHW -> (B, c_i, P): H*W is already contiguous, so this is a free reshape.
        xs = [s.reshape(B, s.shape[1], P) for s in sensor_list]

        tp, n_ptiles = self._choose_tile(B, P)
        grid = (B, n_ptiles)

        itemsize = np.dtype(out_dtype).itemsize
        cost = pl.CostEstimate(
            flops=int(2 * self.num_features * self.ctot * B * P),
            transcendentals=int(self.num_features * B * P),
            bytes_accessed=int(2 * B * self.ctot * P * itemsize),
        )

        in_specs = (
            [pl.BlockSpec((1, c, tp), lambda b, i: (b, 0, i))
             for c in self.enc_channel_list]                                 # sensors
            + [pl.BlockSpec((self.num_features, c), lambda b, i: (0, 0))
               for c in self.enc_channel_list]                               # weight slices
            + [pl.BlockSpec((self.num_features, 1), lambda b, i: (0, 0))]    # bias
        )

        out = pl.pallas_call(
            self._kernel,
            out_shape=jax.ShapeDtypeStruct((B, self.ctot, P), out_dtype),
            grid_spec=pltpu.PrefetchScalarGridSpec(
                num_scalar_prefetch=0,
                grid=grid,
                in_specs=in_specs,
                out_specs=pl.BlockSpec((1, self.ctot, tp), lambda b, i: (b, 0, i)),
            ),
            compiler_params=pltpu.CompilerParams(
                dimension_semantics=("parallel", "parallel"),
                vmem_limit_bytes=48 * 1024 * 1024),
            cost_estimate=cost,
        )(*xs, *self.w_slices, self.b_col)

        return out.reshape(B, self.ctot, H, W)

    def reference(self, sensor_list):
        concat = jnp.concatenate(sensor_list, axis=1)
        perm = jnp.transpose(concat, (0, 2, 3, 1))                           # (B,H,W,Ctot)
        logits = jnp.einsum("bhwc,fc->bhwf", perm, self.weight) + self.bias
        z = jnp.transpose(jax.nn.softmax(logits, axis=-1), (0, 3, 1, 2))     # (B,F,H,W)
        outs = [z[:, f:f + 1, :, :] * s for f, s in enumerate(sensor_list)]
        return jnp.concatenate(outs, axis=1)


if __name__ == "__main__":
    key = jax.random.PRNGKey(0)
    k_mod, k0, k1, k2, k3 = jax.random.split(key, 5)

    enc_channel_list = [4, 6, 8]          # three sensors, Ctot = 18
    module = GatedFusionModuleJAX(enc_channel_list, k_mod)

    # case 1: lane-aligned pixel count (16*16 = 256), B=2
    B, H, W = 2, 16, 16
    sensors = [jax.random.normal(k, (B, c, H, W), jnp.float32)
               for k, c in zip((k0, k1, k2), enc_channel_list)]
    out = jax.block_until_ready(module(sensors))
    ref = module.reference(sensors)
    np.testing.assert_allclose(np.asarray(out), np.asarray(ref), rtol=1e-5, atol=1e-5)
    assert out.shape == (B, sum(enc_channel_list), H, W)

    # case 2: pixel count not a multiple of 128 (16*20 = 320) -> masked tail stores
    H2, W2 = 16, 20
    sensors2 = [jax.random.normal(k, (B, c, H2, W2), jnp.float32)
                for k, c in zip((k1, k2, k3), enc_channel_list)]
    out2 = jax.block_until_ready(module(sensors2))
    ref2 = module.reference(sensors2)
    np.testing.assert_allclose(np.asarray(out2), np.asarray(ref2), rtol=1e-5, atol=1e-5)
    assert out2.shape == (B, sum(enc_channel_list), H2, W2)

    # case 3: B == 1 -> pixel axis split into >= 2 tiles (dual-TensorCore path)
    B3, H3, W3 = 1, 32, 32
    sensors3 = [jax.random.normal(k, (B3, c, H3, W3), jnp.float32)
                for k, c in zip((k3, k0, k1), enc_channel_list)]
    out3 = jax.block_until_ready(module(sensors3))
    ref3 = module.reference(sensors3)
    np.testing.assert_allclose(np.asarray(out3), np.asarray(ref3), rtol=1e-5, atol=1e-5)
    assert out3.shape == (B3, sum(enc_channel_list), H3, W3)

    print("KERNEL_OK")
</pallas_src>

<mosaic_0001>
module attributes {stable_mosaic.version = 11 : i64} {
  func.func @kernel(%arg0: i32, %arg1: i32, %arg2: memref<1x4x256xf32, #tpu.memory_space<vmem>>, %arg3: memref<1x6x256xf32, #tpu.memory_space<vmem>>, %arg4: memref<1x8x256xf32, #tpu.memory_space<vmem>>, %arg5: memref<3x4xf32, #tpu.memory_space<vmem>>, %arg6: memref<3x6xf32, #tpu.memory_space<vmem>>, %arg7: memref<3x8xf32, #tpu.memory_space<vmem>>, %arg8: memref<3x1xf32, #tpu.memory_space<vmem>>, %arg9: memref<1x18x256xf32, #tpu.memory_space<vmem>>) attributes {dimension_semantics = [#tpu.dimension_semantics<parallel>, #tpu.dimension_semantics<parallel>], iteration_bounds = array<i64: 2, 1>, scalar_prefetch = 0 : i64, scratch_operands = 0 : i64, tpu.core_type = #tpu.core_type<tc>, window_params = [{transform_indices = @transform_0, window_bounds = array<i64: 1, 4, 256>}, {transform_indices = @transform_1, window_bounds = array<i64: 1, 6, 256>}, {transform_indices = @transform_2, window_bounds = array<i64: 1, 8, 256>}, {pipeline_mode = #tpu.pipeline_mode<synchronous>, transform_indices = @transform_3, window_bounds = array<i64: 3, 4>}, {pipeline_mode = #tpu.pipeline_mode<synchronous>, transform_indices = @transform_4, window_bounds = array<i64: 3, 6>}, {pipeline_mode = #tpu.pipeline_mode<synchronous>, transform_indices = @transform_5, window_bounds = array<i64: 3, 8>}, {pipeline_mode = #tpu.pipeline_mode<synchronous>, transform_indices = @transform_6, window_bounds = array<i64: 3, 1>}, {transform_indices = @transform_7, window_bounds = array<i64: 1, 18, 256>}]} {
    %c0 = arith.constant 0 : index
    %c0_0 = arith.constant 0 : index
    %c0_1 = arith.constant 0 : index
    %0 = vector.load %arg2[%c0, %c0_0, %c0_1] : memref<1x4x256xf32, #tpu.memory_space<vmem>>, vector<1x4x256xf32>
    %1 = vector.shape_cast %0 : vector<1x4x256xf32> to vector<4x256xf32>
    %c0_2 = arith.constant 0 : index
    %c0_3 = arith.constant 0 : index
    %c0_4 = arith.constant 0 : index
    %2 = vector.load %arg3[%c0_2, %c0_3, %c0_4] : memref<1x6x256xf32, #tpu.memory_space<vmem>>, vector<1x6x256xf32>
    %3 = vector.shape_cast %2 : vector<1x6x256xf32> to vector<6x256xf32>
    %c0_5 = arith.constant 0 : index
    %c0_6 = arith.constant 0 : index
    %c0_7 = arith.constant 0 : index
    %4 = vector.load %arg4[%c0_5, %c0_6, %c0_7] : memref<1x8x256xf32, #tpu.memory_space<vmem>>, vector<1x8x256xf32>
    %5 = vector.shape_cast %4 : vector<1x8x256xf32> to vector<8x256xf32>
    %c0_8 = arith.constant 0 : index
    %c0_9 = arith.constant 0 : index
    %6 = vector.load %arg5[%c0_8, %c0_9] : memref<3x4xf32, #tpu.memory_space<vmem>>, vector<3x4xf32>
    %cst = arith.constant dense<0.000000e+00> : vector<3x256xf32>
    %7 = tpu.matmul %6, %1, %cst {dimension_numbers = #tpu.dot_dimension_numbers<[1], [0], [0], [1], [0, 0, 1, 1], [], []>} : vector<3x4xf32>, vector<4x256xf32>, vector<3x256xf32> -> vector<3x256xf32>
    %c0_10 = arith.constant 0 : index
    %c0_11 = arith.constant 0 : index
    %8 = vector.load %arg6[%c0_10, %c0_11] : memref<3x6xf32, #tpu.memory_space<vmem>>, vector<3x6xf32>
    %cst_12 = arith.constant dense<0.000000e+00> : vector<3x256xf32>
    %9 = tpu.matmul %8, %3, %cst_12 {dimension_numbers = #tpu.dot_dimension_numbers<[1], [0], [0], [1], [0, 0, 1, 1], [], []>} : vector<3x6xf32>, vector<6x256xf32>, vector<3x256xf32> -> vector<3x256xf32>
    %10 = arith.addf %7, %9 : vector<3x256xf32>
    %c0_13 = arith.constant 0 : index
    %c0_14 = arith.constant 0 : index
    %11 = vector.load %arg7[%c0_13, %c0_14] : memref<3x8xf32, #tpu.memory_space<vmem>>, vector<3x8xf32>
    %cst_15 = arith.constant dense<0.000000e+00> : vector<3x256xf32>
    %12 = tpu.matmul %11, %5, %cst_15 {dimension_numbers = #tpu.dot_dimension_numbers<[1], [0], [0], [1], [0, 0, 1, 1], [], []>} : vector<3x8xf32>, vector<8x256xf32>, vector<3x256xf32> -> vector<3x256xf32>
    %13 = arith.addf %10, %12 : vector<3x256xf32>
    %c0_16 = arith.constant 0 : index
    %c0_17 = arith.constant 0 : index
    %14 = vector.load %arg8[%c0_16, %c0_17] : memref<3x1xf32, #tpu.memory_space<vmem>>, vector<3x1xf32>
    %15 = vector.broadcast %14 : vector<3x1xf32> to vector<3x256xf32>
    %16 = arith.addf %13, %15 : vector<3x256xf32>
    %cst_18 = arith.constant dense<0xFF800000> : vector<256xf32>
    %17 = vector.multi_reduction <maximumf>, %16, %cst_18 [0] : vector<3x256xf32> to vector<256xf32>
    %18 = vector.shape_cast %17 : vector<256xf32> to vector<1x256xf32>
    %19 = vector.broadcast %18 : vector<1x256xf32> to vector<3x256xf32>
    %20 = arith.subf %16, %19 : vector<3x256xf32>
    %21 = math.exp %20 : vector<3x256xf32>
    %cst_19 = arith.constant dense<0.000000e+00> : vector<256xf32>
    %22 = vector.multi_reduction <add>, %21, %cst_19 [0] : vector<3x256xf32> to vector<256xf32>
    %23 = vector.shape_cast %22 : vector<256xf32> to vector<1x256xf32>
    %24 = tpu.reciprocal %23 : vector<1x256xf32> -> vector<1x256xf32>
    %25 = vector.broadcast %24 : vector<1x256xf32> to vector<3x256xf32>
    %26 = arith.mulf %21, %25 : vector<3x256xf32>
    %27 = vector.extract_strided_slice %26 {offsets = [0, 0], sizes = [1, 256], strides = [1, 1]} : vector<3x256xf32> to vector<1x256xf32>
    %28 = vector.broadcast %27 : vector<1x256xf32> to vector<4x256xf32>
    %29 = arith.mulf %1, %28 : vector<4x256xf32>
    %c0_20 = arith.constant 0 : index
    %c0_21 = arith.constant 0 : index
    %c0_22 = arith.constant 0 : index
    %30 = vector.load %arg9[%c0_20, %c0_21, %c0_22] : memref<1x18x256xf32, #tpu.memory_space<vmem>>, vector<1x4x256xf32>
    %31 = vector.shape_cast %30 : vector<1x4x256xf32> to vector<4x256xf32>
    %32 = vector.shape_cast %29 : vector<4x256xf32> to vector<1x4x256xf32>
    tpu.vector_store %arg9[%c0_20, %c0_21, %c0_22], %32 {strides = array<i32>} : memref<1x18x256xf32, #tpu.memory_space<vmem>>, vector<1x4x256xf32>,
    %33 = vector.extract_strided_slice %26 {offsets = [1, 0], sizes = [1, 256], strides = [1, 1]} : vector<3x256xf32> to vector<1x256xf32>
    %34 = vector.broadcast %33 : vector<1x256xf32> to vector<6x256xf32>
    %35 = arith.mulf %3, %34 : vector<6x256xf32>
    %c0_23 = arith.constant 0 : index
    %c4 = arith.constant 4 : index
    %c0_24 = arith.constant 0 : index
    %36 = vector.load %arg9[%c0_23, %c4, %c0_24] : memref<1x18x256xf32, #tpu.memory_space<vmem>>, vector<1x6x256xf32>
    %37 = vector.shape_cast %36 : vector<1x6x256xf32> to vector<6x256xf32>
    %38 = vector.shape_cast %35 : vector<6x256xf32> to vector<1x6x256xf32>
    tpu.vector_store %arg9[%c0_23, %c4, %c0_24], %38 {strides = array<i32>} : memref<1x18x256xf32, #tpu.memory_space<vmem>>, vector<1x6x256xf32>,
    %39 = vector.extract_strided_slice %26 {offsets = [2, 0], sizes = [1, 256], strides = [1, 1]} : vector<3x256xf32> to vector<1x256xf32>
    %40 = vector.broadcast %39 : vector<1x256xf32> to vector<8x256xf32>
    %41 = arith.mulf %5, %40 : vector<8x256xf32>
    %c0_25 = arith.constant 0 : index
    %c10 = arith.constant 10 : index
    %c0_26 = arith.constant 0 : index
    %42 = vector.load %arg9[%c0_25, %c10, %c0_26] : memref<1x18x256xf32, #tpu.memory_space<vmem>>, vector<1x8x256xf32>
    %43 = vector.shape_cast %42 : vector<1x8x256xf32> to vector<8x256xf32>
    %44 = vector.shape_cast %41 : vector<8x256xf32> to vector<1x8x256xf32>
    tpu.vector_store %arg9[%c0_25, %c10, %c0_26], %44 {strides = array<i32>} : memref<1x18x256xf32, #tpu.memory_space<vmem>>, vector<1x8x256xf32>,
    return
  }
  func.func @transform_0(%arg0: i32, %arg1: i32) -> (i32, i32, i32) {
    %c0_i32 = arith.constant 0 : i32
    %c0_i32_0 = arith.constant 0 : i32
    return %arg0, %c0_i32, %arg1 : i32, i32, i32
  }
  func.func @transform_1(%arg0: i32, %arg1: i32) -> (i32, i32, i32) {
    %c0_i32 = arith.constant 0 : i32
    %c0_i32_0 = arith.constant 0 : i32
    return %arg0, %c0_i32, %arg1 : i32, i32, i32
  }
  func.func @transform_2(%arg0: i32, %arg1: i32) -> (i32, i32, i32) {
    %c0_i32 = arith.constant 0 : i32
    %c0_i32_0 = arith.constant 0 : i32
    return %arg0, %c0_i32, %arg1 : i32, i32, i32
  }
  func.func @transform_3(%arg0: i32, %arg1: i32) -> (i32, i32) {
    %c0_i32 = arith.constant 0 : i32
    %c0_i32_0 = arith.constant 0 : i32
    %c0_i32_1 = arith.constant 0 : i32
    return %c0_i32, %c0_i32_0 : i32, i32
  }
  func.func @transform_4(%arg0: i32, %arg1: i32) -> (i32, i32) {
    %c0_i32 = arith.constant 0 : i32
    %c0_i32_0 = arith.constant 0 : i32
    %c0_i32_1 = arith.constant 0 : i32
    return %c0_i32, %c0_i32_0 : i32, i32
  }
  func.func @transform_5(%arg0: i32, %arg1: i32) -> (i32, i32) {
    %c0_i32 = arith.constant 0 : i32
    %c0_i32_0 = arith.constant 0 : i32
    %c0_i32_1 = arith.constant 0 : i32
    return %c0_i32, %c0_i32_0 : i32, i32
  }
  func.func @transform_6(%arg0: i32, %arg1: i32) -> (i32, i32) {
    %c0_i32 = arith.constant 0 : i32
    %c0_i32_0 = arith.constant 0 : i32
    %c0_i32_1 = arith.constant 0 : i32
    return %c0_i32, %c0_i32_0 : i32, i32
  }
  func.func @transform_7(%arg0: i32, %arg1: i32) -> (i32, i32, i32) {
    %c0_i32 = arith.constant 0 : i32
    %c0_i32_0 = arith.constant 0 : i32
    return %arg0, %c0_i32, %arg1 : i32, i32, i32
  }
}

</mosaic_0001>

<llo_original>
// kernel: tpu_custom_call.1
$region0: #{tpu_custom_call.1}
  #allocation0 [shape = 'u32[]', space=smem, size = 0x4, offset = 0x4, fixed_abs, tag = 'smem constant byte address 0x4 - core index']
  #allocation1 [shape = 'u32[72,128]{1,0:T(1,128)}', space=vmem, size = 0x9000, scoped, tag = 'internal scratch']
  %s0 = inlined_call_operand.vmem [shape: f32[2,4,256], index: 0, kind: input, shape index: {}]
  %s1 = inlined_call_operand.vmem [shape: f32[2,6,256], index: 1, kind: input, shape index: {}]
  %s2 = inlined_call_operand.vmem [shape: f32[2,8,256], index: 2, kind: input, shape index: {}]
  %s3 = inlined_call_operand.vmem [shape: f32[3,4], index: 3, kind: input, shape index: {}]
  %s4 = inlined_call_operand.vmem [shape: f32[3,6], index: 4, kind: input, shape index: {}]
  %s5 = inlined_call_operand.vmem [shape: f32[3,8], index: 5, kind: input, shape index: {}]
  %s6 = inlined_call_operand.vmem [shape: f32[3,1], index: 6, kind: input, shape index: {}]
  %s7 = inlined_call_operand.vmem [shape: f32[2,18,256], index: 7, kind: output, shape index: {}]
  %s8 = sld [smem:[#allocation0]]
  $region61: #{tpu_custom_call.1} parent=0
    _
  %s10 = ssub.s32 1, %s8
  %s11 = scalar_select 0, %s10, %s8
  loop: start=0, step=1, limit=4
  $region2: #{tpu_custom_call.1} parent=0 // loop_pre_header
    _
  $region3: #{tpu_custom_call.1} parent=0 // loop_header
    %s13 = sphi 0, %s17
    %p14 = scmp.ge.s32.totalorder %s13, 4
    %s20 = sphi 0, %s32
    %s21 = sphi 0, %s28
    %s22 = sphi 0, %s20
    %s23 = sphi 0, %s21
    %s24 = sphi 0, %s22
    %s25 = sphi 0, %s23
    %s37 = sphi 0, %s39
    %s40 = sphi 0, %s37
    %s41 = sphi 0, %s40
    %s57 = sphi 0, %s41
    %s65 = sphi 0, %s67
    %s68 = sphi 0, %s65
    %s69 = sphi 0, %s68
    %s85 = sphi 0, %s69
    %s93 = sphi 0, %s95
    %s96 = sphi 0, %s93
    %s97 = sphi 0, %s96
    %s113 = sphi 0, %s97
    %s117 = sphi 0, %s117
    %s119 = sphi 0, %s117
    %s120 = sphi 0, %s119
    %s134 = sphi 0, %s120
    %s138 = sphi 0, %s138
    %s140 = sphi 0, %s138
    %s141 = sphi 0, %s140
    %s155 = sphi 0, %s141
    %s159 = sphi 0, %s159
    %s161 = sphi 0, %s159
    %s162 = sphi 0, %s161
    %s176 = sphi 0, %s162
    %s180 = sphi 0, %s180
    %s182 = sphi 0, %s180
    %s183 = sphi 0, %s182
    %s197 = sphi 0, %s183
    %s205 = sphi 0, %s207
    %s208 = sphi 0, %s205
    %s209 = sphi 0, %s208
    %s225 = sphi 0, %s209
  $region4: #{tpu_custom_call.1} parent=0 // loop_header_branch
    %16 = sbr.rel (%p14) target = $region8
  $region5: #{tpu_custom_call.1} parent=0 // loop_body
    %s18 = ssub.s32 %s13, 1
    %s19 = ssub.s32 %s13, 2
    %s26 = sadd.s32 1, %s21
    %p27 = scmp.ge.s32.totalorder %s26, 1
    %s28 = scalar_select %p27, 0, %s26
    %s29 = sadd.s32 1, %s20
    %s30 = scalar_select %p27, %s29, %s20
    %p31 = scmp.ge.s32.totalorder %s30, 2
    %s32 = scalar_select %p31, 0, %s30
    %s33 = ssub.s32 %s20, %s32
    %s34 = ssub.s32 %s21, %s28
    %s35 = sor.u32 %s33, %s34
    %p36 = scmp.eq.s32.totalorder %s35, 0
    %s38 = sadd.s32 %s37, 1
    %s39 = scalar_select %p36, %s37, %s38
    %p42 = pneg %p36
    %p43 = scmp.eq.s32.totalorder %s13, 1
    %p44 = por %p42, %p43
    %p45 = scmp.ne.s32.totalorder %s37, %s40
    %p46 = scmp.eq.s32.totalorder %s13, 0
    %p47 = por %p45, %p46
    %p48 = scmp.ne.s32.totalorder %s37, %s40
    %p49 = scmp.eq.s32.totalorder %s18, 1
    %p50 = por %p48, %p49
    %p51 = scmp.ne.s32.totalorder %s40, %s41
    %p52 = scmp.eq.s32.totalorder %s18, 0
    %p53 = por %p51, %p52
    %p54 = scmp.ne.s32.totalorder %s40, %s41
    %p55 = scmp.eq.s32.totalorder %s19, 1
    %p56 = por %p54, %p55
    %p58 = scmp.ne.s32.totalorder %s41, %s57
    %p59 = scmp.eq.s32.totalorder %s19, 0
    %p60 = por %p58, %p59
    %s61 = ssub.s32 %s20, %s32
    %s62 = ssub.s32 %s21, %s28
    %s63 = sor.u32 %s61, %s62
    %p64 = scmp.eq.s32.totalorder %s63, 0
    %s66 = sadd.s32 %s65, 1
    %s67 = scalar_select %p64, %s65, %s66
    %p70 = pneg %p64
    %p71 = scmp.eq.s32.totalorder %s13, 1
    %p72 = por %p70, %p71
    %p73 = scmp.ne.s32.totalorder %s65, %s68
    %p74 = scmp.eq.s32.totalorder %s13, 0
    %p75 = por %p73, %p74
    %p76 = scmp.ne.s32.totalorder %s65, %s68
    %p77 = scmp.eq.s32.totalorder %s18, 1
    %p78 = por %p76, %p77
    %p79 = scmp.ne.s32.totalorder %s68, %s69
    %p80 = scmp.eq.s32.totalorder %s18, 0
    %p81 = por %p79, %p80
    %p82 = scmp.ne.s32.totalorder %s68, %s69
    %p83 = scmp.eq.s32.totalorder %s19, 1
    %p84 = por %p82, %p83
    %p86 = scmp.ne.s32.totalorder %s69, %s85
    %p87 = scmp.eq.s32.totalorder %s19, 0
    %p88 = por %p86, %p87
    %s89 = ssub.s32 %s20, %s32
    %s90 = ssub.s32 %s21, %s28
    %s91 = sor.u32 %s89, %s90
    %p92 = scmp.eq.s32.totalorder %s91, 0
    %s94 = sadd.s32 %s93, 1
    %s95 = scalar_select %p92, %s93, %s94
    %p98 = pneg %p92
    %p99 = scmp.eq.s32.totalorder %s13, 1
    %p100 = por %p98, %p99
    %p101 = scmp.ne.s32.totalorder %s93, %s96
    %p102 = scmp.eq.s32.totalorder %s13, 0
    %p103 = por %p101, %p102
    %p104 = scmp.ne.s32.totalorder %s93, %s96
    %p105 = scmp.eq.s32.totalorder %s18, 1
    %p106 = por %p104, %p105
    %p107 = scmp.ne.s32.totalorder %s96, %s97
    %p108 = scmp.eq.s32.totalorder %s18, 0
    %p109 = por %p107, %p108
    %p110 = scmp.ne.s32.totalorder %s96, %s97
    %p111 = scmp.eq.s32.totalorder %s19, 1
    %p112 = por %p110, %p111
    %p114 = scmp.ne.s32.totalorder %s97, %s113
    %p115 = scmp.eq.s32.totalorder %s19, 0
    %p116 = por %p114, %p115
    %s118 = sadd.s32 %s117, 1
    %p121 = scmp.eq.s32.totalorder %s13, 1
    %p122 = scmp.ne.s32.totalorder %s117, %s119
    %p123 = scmp.eq.s32.totalorder %s13, 0
    %p124 = por %p122, %p123
    %p125 = scmp.ne.s32.totalorder %s117, %s119
    %p126 = scmp.eq.s32.totalorder %s18, 1
    %p127 = por %p125, %p126
    %p128 = scmp.ne.s32.totalorder %s119, %s120
    %p129 = scmp.eq.s32.totalorder %s18, 0
    %p130 = por %p128, %p129
    %p131 = scmp.ne.s32.totalorder %s119, %s120
    %p132 = scmp.eq.s32.totalorder %s19, 1
    %p133 = por %p131, %p132
    %p135 = scmp.ne.s32.totalorder %s120, %s134
    %p136 = scmp.eq.s32.totalorder %s19, 0
    %p137 = por %p135, %p136
    %s139 = sadd.s32 %s138, 1
    %p142 = scmp.eq.s32.totalorder %s13, 1
    %p143 = scmp.ne.s32.totalorder %s138, %s140
    %p144 = scmp.eq.s32.totalorder %s13, 0
    %p145 = por %p143, %p144
    %p146 = scmp.ne.s32.totalorder %s138, %s140
    %p147 = scmp.eq.s32.totalorder %s18, 1
    %p148 = por %p146, %p147
    %p149 = scmp.ne.s32.totalorder %s140, %s141
    %p150 = scmp.eq.s32.totalorder %s18, 0
    %p151 = por %p149, %p150
    %p152 = scmp.ne.s32.totalorder %s140, %s141
    %p153 = scmp.eq.s32.totalorder %s19, 1
    %p154 = por %p152, %p153
    %p156 = scmp.ne.s32.totalorder %s141, %s155
    %p157 = scmp.eq.s32.totalorder %s19, 0
    %p158 = por %p156, %p157
    %s160 = sadd.s32 %s159, 1
    %p163 = scmp.eq.s32.totalorder %s13, 1
    %p164 = scmp.ne.s32.totalorder %s159, %s161
    %p165 = scmp.eq.s32.totalorder %s13, 0
    %p166 = por %p164, %p165
    %p167 = scmp.ne.s32.totalorder %s159, %s161
    %p168 = scmp.eq.s32.totalorder %s18, 1
    %p169 = por %p167, %p168
    %p170 = scmp.ne.s32.totalorder %s161, %s162
    %p171 = scmp.eq.s32.totalorder %s18, 0
    %p172 = por %p170, %p171
    %p173 = scmp.ne.s32.totalorder %s161, %s162
    %p174 = scmp.eq.s32.totalorder %s19, 1
    %p175 = por %p173, %p174
    %p177 = scmp.ne.s32.totalorder %s162, %s176
    %p178 = scmp.eq.s32.totalorder %s19, 0
    %p179 = por %p177, %p178
    %s181 = sadd.s32 %s180, 1
    %p184 = scmp.eq.s32.totalorder %s13, 1
    %p185 = scmp.ne.s32.totalorder %s180, %s182
    %p186 = scmp.eq.s32.totalorder %s13, 0
    %p187 = por %p185, %p186
    %p188 = scmp.ne.s32.totalorder %s180, %s182
    %p189 = scmp.eq.s32.totalorder %s18, 1
    %p190 = por %p188, %p189
    %p191 = scmp.ne.s32.totalorder %s182, %s183
    %p192 = scmp.eq.s32.totalorder %s18, 0
    %p193 = por %p191, %p192
    %p194 = scmp.ne.s32.totalorder %s182, %s183
    %p195 = scmp.eq.s32.totalorder %s19, 1
    %p196 = por %p194, %p195
    %p198 = scmp.ne.s32.totalorder %s183, %s197
    %p199 = scmp.eq.s32.totalorder %s19, 0
    %p200 = por %p198, %p199
    %s201 = ssub.s32 %s20, %s32
    %s202 = ssub.s32 %s21, %s28
    %s203 = sor.u32 %s201, %s202
    %p204 = scmp.eq.s32.totalorder %s203, 0
    %s206 = sadd.s32 %s205, 1
    %s207 = scalar_select %p204, %s205, %s206
    %p210 = pneg %p204
    %p211 = scmp.eq.s32.totalorder %s13, 1
    %p212 = por %p210, %p211
    %p213 = scmp.ne.s32.totalorder %s205, %s208
    %p214 = scmp.eq.s32.totalorder %s13, 0
    %p215 = por %p213, %p214
    %p216 = scmp.ne.s32.totalorder %s205, %s208
    %p217 = scmp.eq.s32.totalorder %s18, 1
    %p218 = por %p216, %p217
    %p219 = scmp.ne.s32.totalorder %s208, %s209
    %p220 = scmp.eq.s32.totalorder %s18, 0
    %p221 = por %p219, %p220
    %p222 = scmp.ne.s32.totalorder %s208, %s209
    %p223 = scmp.eq.s32.totalorder %s19, 1
    %p224 = por %p222, %p223
    %p226 = scmp.ne.s32.totalorder %s209, %s225
    %p227 = scmp.eq.s32.totalorder %s19, 0
    %p228 = por %p226, %p227
    %p229 = scmp.le.s32.totalorder 1, %s13
    %p230 = scmp.lt.s32.totalorder %s13, 3
    %p231 = pnand %p229, %p230
    %p232 = pneg %p231
    // Predicated region
    $region9: #{tpu_custom_call.1} parent=5 // pred_check
      _
    $region10: #{tpu_custom_call.1} parent=5 // pred_check_branch
      %234 = sbr.rel (%p231) target = $region12
    $region11: #{tpu_custom_call.1} parent=5 // pred_region
      %s235 = ssub.s32 %s13, 1
      // Predicated region
      $region13: #{tpu_custom_call.1} parent=11 // pred_check
        %p236 = pneg %p130
      $region14: #{tpu_custom_call.1} parent=11 // pred_check_branch
        %238 = sbr.rel (%p236) target = $region16
      $region15: #{tpu_custom_call.1} parent=11 // pred_region
        _
      $region16: #{tpu_custom_call.1} parent=11 // pred_fallthru
        _
      // Predicated region
      $region17: #{tpu_custom_call.1} parent=11 // pred_check
        %p239 = pneg %p151
      $region18: #{tpu_custom_call.1} parent=11 // pred_check_branch
        %241 = sbr.rel (%p239) target = $region20
      $region19: #{tpu_custom_call.1} parent=11 // pred_region
        _
      $region20: #{tpu_custom_call.1} parent=11 // pred_fallthru
        _
      // Predicated region
      $region21: #{tpu_custom_call.1} parent=11 // pred_check
        %p242 = pneg %p172
      $region22: #{tpu_custom_call.1} parent=11 // pred_check_branch
        %244 = sbr.rel (%p242) target = $region24
      $region23: #{tpu_custom_call.1} parent=11 // pred_region
        _
      $region24: #{tpu_custom_call.1} parent=11 // pred_fallthru
        _
      // Predicated region
      $region25: #{tpu_custom_call.1} parent=11 // pred_check
        %p245 = pneg %p193
      $region26: #{tpu_custom_call.1} parent=11 // pred_check_branch
        %247 = sbr.rel (%p245) target = $region28
      $region27: #{tpu_custom_call.1} parent=11 // pred_region
        _
      $region28: #{tpu_custom_call.1} parent=11 // pred_fallthru
        _
    $region12: #{tpu_custom_call.1} parent=5 // pred_fallthru
      _
    %p248 = scmp.lt.s32.totalorder %s13, 2
    // Predicated region
    $region29: #{tpu_custom_call.1} parent=5 // pred_check
      %p249 = pneg %p248
    $region30: #{tpu_custom_call.1} parent=5 // pred_check_branch
      %251 = sbr.rel (%p249) target = $region32
    $region31: #{tpu_custom_call.1} parent=5 // pred_region
      // Predicated region
      $region33: #{tpu_custom_call.1} parent=31 // pred_check
        %p252 = pneg %p47
      $region34: #{tpu_custom_call.1} parent=31 // pred_check_branch
        %254 = sbr.rel (%p252) target = $region36
      $region35: #{tpu_custom_call.1} parent=31 // pred_region
        %s255 = smul.u32 2, %s21
        %p256 = scmp.lt.s32.totalorder %s20, 1
        %s257 = scalar_select %p256, %s20, 1
        %p258 = scmp.lt.s32.totalorder %s255, 1
        %s259 = scalar_select %p258, %s255, 1
        %s260 = smul.addr %s257, 2
        %s261 = sadd.s32 %s259, %s260
        %s262 = smul.addr %s261, 4
        %s263 = scalar_lea.vmem %s0, %s262
        %s264 = smul.u32 2, %s21
      $region36: #{tpu_custom_call.1} parent=31 // pred_fallthru
        _
      // Predicated region
      $region37: #{tpu_custom_call.1} parent=31 // pred_check
        %p265 = pneg %p75
      $region38: #{tpu_custom_call.1} parent=31 // pred_check_branch
        %267 = sbr.rel (%p265) target = $region40
      $region39: #{tpu_custom_call.1} parent=31 // pred_region
        %s268 = smul.u32 2, %s21
        %p269 = scmp.lt.s32.totalorder %s20, 1
        %s270 = scalar_select %p269, %s20, 1
        %p271 = scmp.lt.s32.totalorder %s268, 1
        %s272 = scalar_select %p271, %s268, 1
        %s273 = smul.addr %s270, 2
        %s274 = sadd.s32 %s272, %s273
        %s275 = smul.addr %s274, 8
        %s276 = scalar_lea.vmem %s1, %s275
        %s277 = smul.u32 2, %s21
      $region40: #{tpu_custom_call.1} parent=31 // pred_fallthru
        _
      // Predicated region
      $region41: #{tpu_custom_call.1} parent=31 // pred_check
        %p278 = pneg %p103
      $region42: #{tpu_custom_call.1} parent=31 // pred_check_branch
        %280 = sbr.rel (%p278) target = $region44
      $region43: #{tpu_custom_call.1} parent=31 // pred_region
        %s281 = smul.u32 2, %s21
        %p282 = scmp.lt.s32.totalorder %s20, 1
        %s283 = scalar_select %p282, %s20, 1
        %p284 = scmp.lt.s32.totalorder %s281, 1
        %s285 = scalar_select %p284, %s281, 1
        %s286 = smul.addr %s283, 2
        %s287 = sadd.s32 %s285, %s286
        %s288 = smul.addr %s287, 8
        %s289 = scalar_lea.vmem %s2, %s288
        %s290 = smul.u32 2, %s21
      $region44: #{tpu_custom_call.1} parent=31 // pred_fallthru
        _
    $region32: #{tpu_custom_call.1} parent=5 // pred_fallthru
      _
    %p291 = scmp.le.s32.totalorder 1, %s13
    %p292 = scmp.lt.s32.totalorder %s13, 3
    %p293 = pnand %p291, %p292
    %p294 = pneg %p293
    // Predicated region
    $region45: #{tpu_custom_call.1} parent=5 // pred_check
      _
    $region46: #{tpu_custom_call.1} parent=5 // pred_check_branch
      %296 = sbr.rel (%p293) target = $region48
    $region47: #{tpu_custom_call.1} parent=5 // pred_region
      %s297 = ssub.s32 %s13, 1
      %s298 = smul.u32 2, %s23
      %p299 = scmp.lt.s32.totalorder %s22, 1
      %s300 = scalar_select %p299, %s22, 1
      %p301 = scmp.lt.s32.totalorder %s298, 1
      %s302 = scalar_select %p301, %s298, 1
      %s303 = smul.addr %s300, 2
      %s304 = sadd.s32 %s302, %s303
      %s305 = smul.addr %s304, 4
      %s306 = scalar_lea.vmem %s0, %s305
      %p307 = pneg %p53
      %p308 = pneg %p50
      %s309 = smul.u32 2, %s23
      %p310 = scmp.lt.s32.totalorder %s22, 1
      %s311 = scalar_select %p310, %s22, 1
      %p312 = scmp.lt.s32.totalorder %s309, 1
      %s313 = scalar_select %p312, %s309, 1
      %s314 = smul.addr %s311, 2
      %s315 = sadd.s32 %s313, %s314
      %s316 = smul.addr %s315, 8
      %s317 = scalar_lea.vmem %s1, %s316
      %p318 = pneg %p81
      %p319 = pneg %p78
      %s320 = smul.u32 2, %s23
      %p321 = scmp.lt.s32.totalorder %s22, 1
      %s322 = scalar_select %p321, %s22, 1
      %p323 = scmp.lt.s32.totalorder %s320, 1
      %s324 = scalar_select %p323, %s320, 1
      %s325 = smul.addr %s322, 2
      %s326 = sadd.s32 %s324, %s325
      %s327 = smul.addr %s326, 8
      %s328 = scalar_lea.vmem %s2, %s327
      %p329 = pneg %p109
      %p330 = pneg %p106
      %p331 = pneg %p130
      %p332 = pneg %p127
      %p333 = pneg %p151
      %p334 = pneg %p148
      %p335 = pneg %p172
      %p336 = pneg %p169
      %p337 = pneg %p193
      %p338 = pneg %p190
      %p339 = pneg %p221
      %p340 = pneg %p218
      %s341 = smul.u32 2, %s23
      %p342 = scmp.lt.s32.totalorder %s22, 1
      %s343 = scalar_select %p342, %s22, 1
      %p344 = scmp.lt.s32.totalorder %s341, 1
      %s345 = scalar_select %p344, %s341, 1
      %s346 = smul.addr %s343, 6
      %s347 = sadd.s32 %s345, %s346
      %s348 = smul.addr %s347, 8
      %s349 = scalar_lea.vmem %s7, %s348
      %s350 = smul.u32 2, %s23
      %p351 = scmp.lt.s32.totalorder %s22, 1
      %s352 = scalar_select %p351, %s22, 1
      %p353 = scmp.lt.s32.totalorder %s350, 1
      %s354 = scalar_select %p353, %s350, 1
      %s355 = smul.addr %s352, 2
      %s356 = sadd.s32 %s354, %s355
      %s357 = smul.addr %s356, 4
      %s358 = scalar_lea.vmem %s0, %s357
      %s359 = smul.u32 2, %s23
      %s360 = smul.u32 2, %s23
      %p361 = scmp.lt.s32.totalorder %s22, 1
      %s362 = scalar_select %p361, %s22, 1
      %p363 = scmp.lt.s32.totalorder %s360, 1
      %s364 = scalar_select %p363, %s360, 1
      %s365 = smul.addr %s362, 2
      %s366 = sadd.s32 %s364, %s365
      %s367 = smul.addr %s366, 8
      %s368 = scalar_lea.vmem %s1, %s367
      %s369 = smul.u32 2, %s23
      %s370 = smul.u32 2, %s23
      %p371 = scmp.lt.s32.totalorder %s22, 1
      %s372 = scalar_select %p371, %s22, 1
      %p373 = scmp.lt.s32.totalorder %s370, 1
      %s374 = scalar_select %p373, %s370, 1
      %s375 = smul.addr %s372, 2
      %s376 = sadd.s32 %s374, %s375
      %s377 = smul.addr %s376, 8
      %s378 = scalar_lea.vmem %s2, %s377
      %s379 = smul.u32 2, %s23
      %s380 = smul.u32 2, %s23
      %p381 = scmp.lt.s32.totalorder %s22, 1
      %s382 = scalar_select %p381, %s22, 1
      %p383 = scmp.lt.s32.totalorder %s380, 1
      %s384 = scalar_select %p383, %s380, 1
      %s385 = smul.addr %s382, 6
      %s386 = sadd.s32 %s384, %s385
      %s387 = smul.addr %s386, 8
      %s388 = scalar_lea.vmem %s7, %s387
      %s389 = smul.u32 2, %s23
      %v390 = vld [vmem:[%s358] sm:$0xff]
      %v391 = vld [vmem:[%s368] sm:$0x3f]
      %v392 = vld [vmem:[%s368 + $0x8] sm:$0x3f]
      %v393 = vld [vmem:[%s378] sm:$0xff]
      %v394 = vld [vmem:[%s378 + $0x8] sm:$0xff]
      %v395 = vld [vmem:[%s3] sm:$0x7]
      %v396 = vld [vmem:[%s4] sm:$0x7]
      %vm397 = vcmask 48128
      %v399 = vsel %vm397, %v396, 0
      %vm401 = vcmask 1045504
      %v403 = vsel %vm401, %v391, 0
      %v406 = vsel %vm401, %v392, 0
      %408 = vmatpush.msra.mxu0 0.0
      %409 = vmatpush.msra.mxu0 0.0
      %410 = vmatpush.msra.mxu0 0.0
      %411 = vmatpush.msra.mxu0 0.0
      %412 = vmatpush.msra.mxu0 0.0
      %413 = vmatpush.msra.mxu0 0.0
      %414 = vmatpush.msra.mxu0 0.0
      %415 = vmatpush.msra.mxu0 0.0
      %416 = vmatpush.msra.mxu0 0.0
      %417 = vmatpush.msra.mxu0 0.0
      %418 = vmatpush.msra.mxu0 0.0
      %419 = vmatpush.msra.mxu0 0.0
      %420 = vmatpush.msra.mxu0 0.0
      %421 = vmatpush.msra.mxu0 0.0
      %422 = vmatpush.msra.mxu0 0.0
      %423 = vmatpush.msra.mxu0 %v403
      %424 = vmatmul.f32.gmra.mxu0 %v399
      %v425 = vpop.f32.mrf.mxu0
      %v426 = vadd.f32 0.0, %v425
      %427 = vdwg.mxu0
      %428 = vmatpush.msra.mxu0 0.0
      %429 = vmatpush.msra.mxu0 0.0
      %430 = vmatpush.msra.mxu0 0.0
      %431 = vmatpush.msra.mxu0 0.0
      %432 = vmatpush.msra.mxu0 0.0
      %433 = vmatpush.msra.mxu0 0.0
      %434 = vmatpush.msra.mxu0 0.0
      %435 = vmatpush.msra.mxu0 0.0
      %436 = vmatpush.msra.mxu0 0.0
      %437 = vmatpush.msra.mxu0 0.0
      %438 = vmatpush.msra.mxu0 0.0
      %439 = vmatpush.msra.mxu0 0.0
      %440 = vmatpush.msra.mxu0 0.0
      %441 = vmatpush.msra.mxu0 0.0
      %442 = vmatpush.msra.mxu0 0.0
      %443 = vmatpush.msra.mxu0 %v406
      %444 = vmatmul.f32.gmra.mxu0 %v399
      %v445 = vpop.f32.mrf.mxu0
      %v446 = vadd.f32 0.0, %v445
      %447 = vdwg.mxu0
      %449 = vst [vmem:[#allocation1] ss:$2 sm:$0xff] %v390
      %v450 = vld.sshfl [vmem:[#allocation1] sm:$0xff pattern:$0x75316420]
      %v451 = vld.sshfl [vmem:[#allocation1 + $0x8] sm:$0xff pattern:$0x75316420]
      %vm452 = vcmask 31744
      %v454 = vsel %vm452, %v395, 0
      %vm456 = vcmask 1043456
      %v457 = vsel %vm456, %v450, 0
      %v459 = vsel %vm456, %v451, 0
      %461 = vmatpush.msra.mxu0 0.0
      %462 = vmatpush.msra.mxu0 0.0
      %463 = vmatpush.msra.mxu0 0.0
      %464 = vmatpush.msra.mxu0 0.0
      %465 = vmatpush.msra.mxu0 0.0
      %466 = vmatpush.msra.mxu0 0.0
      %467 = vmatpush.msra.mxu0 0.0
      %468 = vmatpush.msra.mxu0 0.0
      %469 = vmatpush.msra.mxu0 0.0
      %470 = vmatpush.msra.mxu0 0.0
      %471 = vmatpush.msra.mxu0 0.0
      %472 = vmatpush.msra.mxu0 0.0
      %473 = vmatpush.msra.mxu0 0.0
      %474 = vmatpush.msra.mxu0 0.0
      %475 = vmatpush.msra.mxu0 0.0
      %476 = vmatpush.msra.mxu0 %v457
      %477 = vmatmul.f32.gmra.mxu0 %v454
      %v478 = vpop.f32.mrf.mxu0
      %v479 = vadd.f32 %v426, %v478
      %480 = vdwg.mxu0
      %481 = vmatpush.msra.mxu0 0.0
      %482 = vmatpush.msra.mxu0 0.0
      %483 = vmatpush.msra.mxu0 0.0
      %484 = vmatpush.msra.mxu0 0.0
      %485 = vmatpush.msra.mxu0 0.0
      %486 = vmatpush.msra.mxu0 0.0
      %487 = vmatpush.msra.mxu0 0.0
      %488 = vmatpush.msra.mxu0 0.0
      %489 = vmatpush.msra.mxu0 0.0
      %490 = vmatpush.msra.mxu0 0.0
      %491 = vmatpush.msra.mxu0 0.0
      %492 = vmatpush.msra.mxu0 0.0
      %493 = vmatpush.msra.mxu0 0.0
      %494 = vmatpush.msra.mxu0 0.0
      %495 = vmatpush.msra.mxu0 0.0
      %496 = vmatpush.msra.mxu0 %v459
      %497 = vmatmul.f32.gmra.mxu0 %v454
      %v498 = vpop.f32.mrf.mxu0
      %v499 = vadd.f32 %v446, %v498
      %500 = vdwg.mxu0
      %v501 = vld [vmem:[%s5] sm:$0x7]
      %vm502 = vcmask 64512
      %v504 = vsel %vm502, %v501, 0
      %506 = vmatpush.msra.mxu0 0.0
      %507 = vmatpush.msra.mxu0 0.0
      %508 = vmatpush.msra.mxu0 0.0
      %509 = vmatpush.msra.mxu0 0.0
      %510 = vmatpush.msra.mxu0 0.0
      %511 = vmatpush.msra.mxu0 0.0
      %512 = vmatpush.msra.mxu0 0.0
      %513 = vmatpush.msra.mxu0 0.0
      %514 = vmatpush.msra.mxu0 0.0
      %515 = vmatpush.msra.mxu0 0.0
      %516 = vmatpush.msra.mxu0 0.0
      %517 = vmatpush.msra.mxu0 0.0
      %518 = vmatpush.msra.mxu0 0.0
      %519 = vmatpush.msra.mxu0 0.0
      %520 = vmatpush.msra.mxu0 0.0
      %521 = vmatpush.msra.mxu0 %v393
      %522 = vmatmul.f32.gmra.mxu0 %v504
      %v523 = vpop.f32.mrf.mxu0
      %v524 = vadd.f32 0.0, %v523
      %525 = vdwg.mxu0
      %526 = vmatpush.msra.mxu0 0.0
      %527 = vmatpush.msra.mxu0 0.0
      %528 = vmatpush.msra.mxu0 0.0
      %529 = vmatpush.msra.mxu0 0.0
      %530 = vmatpush.msra.mxu0 0.0
      %531 = vmatpush.msra.mxu0 0.0
      %532 = vmatpush.msra.mxu0 0.0
      %533 = vmatpush.msra.mxu0 0.0
      %534 = vmatpush.msra.mxu0 0.0
      %535 = vmatpush.msra.mxu0 0.0
      %536 = vmatpush.msra.mxu0 0.0
      %537 = vmatpush.msra.mxu0 0.0
      %538 = vmatpush.msra.mxu0 0.0
      %539 = vmatpush.msra.mxu0 0.0
      %540 = vmatpush.msra.mxu0 0.0
      %541 = vmatpush.msra.mxu0 %v394
      %542 = vmatmul.f32.gmra.mxu0 %v504
      %v543 = vpop.f32.mrf.mxu0
      %v544 = vadd.f32 0.0, %v543
      %545 = vdwg.mxu0
      %v546 = vadd.f32 %v479, %v524
      %v547 = vadd.f32 %v499, %v544
      %v548 = vld [vmem:[%s6] sm:$0x7]
      %550 = vset.pattern.permute.xlu0 0
      %551 = vperm.xlu0 %550, %v548
      %v552 = vpop.permute.xlu0 %551
      %v554 = vadd.f32 %v546, %v552
      %v555 = vadd.f32 %v547, %v552
      %vm556 = vcmask 1042432
      %v557 = vsel %vm556, %v554, -inf
      %v558 = vrot.slane %v557, 4
      %v559 = vmax.f32 %v557, %v558
      %v560 = vrot.slane %v559, 2
      %v561 = vmax.f32 %v559, %v560
      %v562 = vrot.slane %v561, 1
      %v563 = vmax.f32 %v561, %v562
      %v564 = vsel %vm556, %v555, -inf
      %v565 = vrot.slane %v564, 4
      %v566 = vmax.f32 %v564, %v565
      %v567 = vrot.slane %v566, 2
      %v568 = vmax.f32 %v566, %v567
      %v569 = vrot.slane %v568, 1
      %v570 = vmax.f32 %v568, %v569
      %v571 = vsub.f32 %v554, %v563
      %v572 = vsub.f32 %v555, %v570
      %v573 = vmul.f32 %v571, 1.442695
      %v574 = vpow.pop %v573
      %v575 = vmul.f32 %v572, 1.442695
      %v576 = vpow.pop %v575
      %v577 = vsel %vm556, %v574, 0.0
      %v578 = vrot.slane %v577, 4
      %v579 = vadd.f32 %v577, %v578
      %v580 = vrot.slane %v579, 2
      %v581 = vadd.f32 %v579, %v580
      %v582 = vrot.slane %v581, 1
      %v583 = vadd.f32 %v581, %v582
      %v584 = vsel %vm556, %v576, 0.0
      %v585 = vrot.slane %v584, 4
      %v586 = vadd.f32 %v584, %v585
      %v587 = vrot.slane %v586, 2
      %v588 = vadd.f32 %v586, %v587
      %v589 = vrot.slane %v588, 1
      %v590 = vadd.f32 %v588, %v589
      %v591 = vrcp.pop %v583
      %v592 = vmul.f32 %v583, %v591
      %v593 = vsub.f32 1.0, %v592
      %v594 = vmul.f32 %v591, %v593
      %v595 = vadd.f32 %v591, %v594
      %vm596 = vweird.f32 %v583
      %vm597 = vweird.f32 %v591
      %vm598 = vmor %vm596, %vm597
      %v599 = vsel %vm598, %v591, %v595
      %v600 = vand.u32 2147483647, %v583
      %vm601 = vcmp.eq.f32.partialorder %v600, 8.507059e+37
      %v602 = vand.u32 %v583, 2147483648
      %v603 = vor.u32 1.1754944e-38, %v602
      %v604 = vsel %vm601, %v603, %v599
      %v605 = vrcp.pop %v590
      %v606 = vmul.f32 %v590, %v605
      %v607 = vsub.f32 1.0, %v606
      %v608 = vmul.f32 %v605, %v607
      %v609 = vadd.f32 %v605, %v608
      %vm610 = vweird.f32 %v590
      %vm611 = vweird.f32 %v605
      %vm612 = vmor %vm610, %vm611
      %v613 = vsel %vm612, %v605, %v609
      %v614 = vand.u32 2147483647, %v590
      %vm615 = vcmp.eq.f32.partialorder %v614, 8.507059e+37
      %v616 = vand.u32 %v590, 2147483648
      %v617 = vor.u32 1.1754944e-38, %v616
      %v618 = vsel %vm615, %v617, %v613
      %v619 = vmul.f32 %v574, %v604
      %v620 = vmul.f32 %v576, %v618
      %v621 = vperm.slane %v619, 0
      %v622 = vperm.slane %v620, 0
      %v625 = vrot.slane %v622, 4
      %v626 = vsel %vm456, %v621, %v625
      %v628 = vmul.f32 %v390, %v626
      %630 = vst [vmem:[#allocation1] ss:$2 sm:$0xff] %v628
      %v631 = vld.sshfl [vmem:[#allocation1] sm:$0xff pattern:$0x75316420]
      %v632 = vld.sshfl [vmem:[#allocation1 + $0x8] sm:$0xff pattern:$0x75316420]
      %635 = vst [vmem:[%s388] sm:$0xf] %v631
      %636 = vst [vmem:[%s388 + $0x8] sm:$0xf] %v632
      %v637 = vperm.slane %v619, 1
      %v638 = vperm.slane %v620, 1
      %v639 = vmul.f32 %v391, %v637
      %v640 = vmul.f32 %v392, %v638
      %v643 = vrot.slane %v639, 4
      %v644 = vrot.slane %v640, 4
      %647 = vst [vmem:[%s388] sm:$0xf0] %v643
      %648 = vst [vmem:[%s388 + $0x8] sm:$0xf0] %v644
      %649 = vst [vmem:[%s388 + $0x10] sm:$0x3] %v643
      %650 = vst [vmem:[%s388 + $0x18] sm:$0x3] %v644
      %v651 = vperm.slane %v619, 2
      %v652 = vperm.slane %v620, 2
      %v653 = vmul.f32 %v393, %v651
      %v654 = vmul.f32 %v394, %v652
      %v657 = vrot.slane %v653, 6
      %v658 = vrot.slane %v654, 6
      %661 = vst [vmem:[%s388 + $0x10] sm:$0xfc] %v657
      %662 = vst [vmem:[%s388 + $0x18] sm:$0xfc] %v658
      %663 = vst [vmem:[%s388 + $0x20] sm:$0x3] %v657
      %664 = vst [vmem:[%s388 + $0x28] sm:$0x3] %v658
      %s665 = smul.u32 2, %s23
      %p666 = scmp.lt.s32.totalorder %s22, 1
      %s667 = scalar_select %p666, %s22, 1
      %p668 = scmp.lt.s32.totalorder %s665, 1
      %s669 = scalar_select %p668, %s665, 1
      %s670 = smul.addr %s667, 6
      %s671 = sadd.s32 %s669, %s670
      %s672 = smul.addr %s671, 8
      %s673 = scalar_lea.vmem %s7, %s672
      // Predicated region
      $region49: #{tpu_custom_call.1} parent=47 // pred_check
        %p674 = pneg %p218
      $region50: #{tpu_custom_call.1} parent=47 // pred_check_branch
        %676 = sbr.rel (%p674) target = $region52
      $region51: #{tpu_custom_call.1} parent=47 // pred_region
        %s677 = smul.u32 2, %s23
      $region52: #{tpu_custom_call.1} parent=47 // pred_fallthru
        _
    $region48: #{tpu_custom_call.1} parent=5 // pred_fallthru
      _
    %p678 = scmp.le.s32.totalorder 2, %s13
    // Predicated region
    $region53: #{tpu_custom_call.1} parent=5 // pred_check
      %p679 = pneg %p678
    $region54: #{tpu_custom_call.1} parent=5 // pred_check_branch
      %681 = sbr.rel (%p679) target = $region56
    $region55: #{tpu_custom_call.1} parent=5 // pred_region
      %s682 = ssub.s32 %s13, 2
      // Predicated region
      $region57: #{tpu_custom_call.1} parent=55 // pred_check
        %p683 = pneg %p224
      $region58: #{tpu_custom_call.1} parent=55 // pred_check_branch
        %685 = sbr.rel (%p683) target = $region60
      $region59: #{tpu_custom_call.1} parent=55 // pred_region
        %s686 = smul.u32 2, %s25
        %p687 = scmp.lt.s32.totalorder %s24, 1
        %s688 = scalar_select %p687, %s24, 1
        %p689 = scmp.lt.s32.totalorder %s686, 1
        %s690 = scalar_select %p689, %s686, 1
        %s691 = smul.addr %s688, 6
        %s692 = sadd.s32 %s690, %s691
        %s693 = smul.addr %s692, 8
        %s694 = scalar_lea.vmem %s7, %s693
      $region60: #{tpu_custom_call.1} parent=55 // pred_fallthru
        _
    $region56: #{tpu_custom_call.1} parent=5 // pred_fallthru
      _
  $region6: #{tpu_custom_call.1} parent=0 // loop_footer
    %s17 = sadd.s32 1, %s13
  $region7: #{tpu_custom_call.1} parent=0 // loop_footer_branch
    %12 = sbr.rel target = $region3
  $region8: #{tpu_custom_call.1} parent=0 // loop_exit
    _

</llo_original>
